<compile_context>
chip_gen: v5e
topology: v5e:2x2
jax: 0.10.0
libtpu: 0.0.40
codegen_flags: <defaults>
</compile_context>

<pallas_src>
import math
import functools
import numpy as np
import jax
import jax.numpy as jnp
from jax.experimental import pallas as pl
from jax.experimental.pallas import tpu as pltpu


# ----------------------------------------------------------------------------
# Init-time precompute (mirrors STFTPositionalEncoding._precompute_stft_encodings)
# ----------------------------------------------------------------------------
def _stft_mag_phase(signal, n_fft, hop_length, window_size):
    """Replicates torch.stft(center=True, pad_mode='reflect', onesided=True)."""
    L = len(signal)
    nf = min(n_fft, L)
    hop = min(hop_length, L // 2)
    wlen = min(window_size, L)
    # periodic Hann window (torch.hann_window default)
    window = 0.5 * (1.0 - np.cos(2.0 * np.pi * np.arange(wlen) / wlen))
    # (wlen == nf for the module's defaults, so no window centering/padding needed)
    pad = nf // 2
    padded = np.pad(signal, pad, mode="reflect")
    n_frames = 1 + (len(padded) - nf) // hop
    frames = np.stack(
        [padded[t * hop : t * hop + nf] * window for t in range(n_frames)], axis=0
    )
    spec = np.fft.rfft(frames, n=nf, axis=-1).T  # (freq, frames) like torch.stft
    return np.abs(spec).ravel(), np.angle(spec).ravel()


def _stft_features(h, w, n_fft, hop_length, window_size):
    y_sig = np.sin(2.0 * math.pi * np.arange(h, dtype=np.float64) / h)
    x_sig = np.sin(2.0 * math.pi * np.arange(w, dtype=np.float64) / w)
    y_mag, y_phase = _stft_mag_phase(y_sig, n_fft, hop_length, window_size)
    x_mag, x_phase = _stft_mag_phase(x_sig, n_fft, hop_length, window_size)
    return np.concatenate([y_mag, y_phase, x_mag, x_phase]).astype(np.float32)


def make_stft_pos_enc(dim, h=8, w=8, window_size=16, hop_length=8, n_fft=32):
    """Builds the (h*w, dim) positional table used by forward() in 'add' mode
    (i.e. pos_enc[:, 1:, :] — the CLS row is zeros and gets sliced off anyway)."""
    # TODO(synk): the numpy STFT re-implementation matches torch.stft for the
    # module defaults; re-validate against the PyTorch buffer for exotic
    # (h, w, window_size, hop_length, n_fft) combos.
    feats = _stft_features(h, w, n_fft, hop_length, window_size)
    n = h * w
    pe = np.zeros((n, dim), dtype=np.float32)
    for pos in range(n):
        f = feats[pos % len(feats)]
        for k in range(dim):
            if k % 4 == 0:
                pe[pos, k] = f * math.sin(k * pos / dim)
            elif k % 4 == 1:
                pe[pos, k] = f * math.cos(k * pos / dim)
            elif k % 4 == 2:
                pe[pos, k] = math.sin(2.0 * math.pi * pos / n + k / dim)
            else:
                pe[pos, k] = math.cos(2.0 * math.pi * pos / n + k / dim)
    return jnp.asarray(pe)


# ----------------------------------------------------------------------------
# Pallas kernel: out = x + pos_enc  (broadcast over batch rows, lane-dense)
# ----------------------------------------------------------------------------
def _add_pe_kernel(x_ref, pe_ref, o_ref):
    # x_ref: (bt, lt), pe_ref: (1, lt) -> broadcast add over batch rows, done in
    # the promoted (output) dtype to match PyTorch's bf16+f32 -> f32 semantics.
    # The broadcast + add are free filler under the HBM-bandwidth bound.
    o_ref[...] = x_ref[...].astype(o_ref.dtype) + pe_ref[...].astype(o_ref.dtype)


def _sublane_pack(dtype):
    """Sublane packing factor: 8 for 4-byte, 16 for 2-byte, 32 for 1-byte dtypes."""
    return max(8, 32 // jnp.dtype(dtype).itemsize)


# ~4 MiB tiles: amortizes ~0.35 us/step overhead while keeping the
# double-buffered footprint well under every chip's scoped-VMEM budget.
_TARGET_TILE_BYTES = 4 * 1024 * 1024


def stft_pe_add(x, pe_flat, *, donate_x=False):
    """Forward pass of STFTPositionalEncoding (mode='add').

    x:       (B, N, D) activations.
    pe_flat: (1, N*D) positional table (float32), precomputed once at init.
    """
    B, N, D = x.shape
    L = N * D  # lane-dense flattened token*dim axis (2048 = 16*128 for defaults)
    assert pe_flat.shape == (1, L)

    out_dtype = jnp.promote_types(x.dtype, pe_flat.dtype)
    x_flat = x.reshape(B, L)

    pack = _sublane_pack(x.dtype)
    itemsize = max(jnp.dtype(x.dtype).itemsize, jnp.dtype(out_dtype).itemsize)

    # --- L-axis tiling fallback: only when a single pack-row tile would blow
    # the budget, and only if L is a multiple of 128 so blocks stay lane-aligned.
    if pack * L * itemsize > _TARGET_TILE_BYTES and L % 128 == 0:
        lt = max(128, (_TARGET_TILE_BYTES // (pack * itemsize)) // 128 * 128)
        lt = min(lt, L)
    else:
        lt = L

    # --- batch-row tiling: multiple of the sublane pack, targeting ~4 MiB.
    rows_budget = max(1, _TARGET_TILE_BYTES // (lt * itemsize))
    bt = min(B, max(pack, (rows_budget // pack) * pack))
    # Guarantee >= 2 grid steps along batch when B allows it, so v7x's two
    # TensorCores (dimension_semantics="parallel") both contribute bandwidth.
    if B > pack:
        half = -(-B // 2)                  # ceil(B / 2)
        half = -(-half // pack) * pack     # round up to the sublane pack
        bt = min(bt, half)
    if bt >= B:
        bt = B  # full batch dim in one block (allowed even if not pack-aligned)

    grid_b = pl.cdiv(B, bt)
    grid_l = pl.cdiv(L, lt)

    # Explicit scoped-VMEM budget: double-buffered x tile + out tile + pe block.
    tile_in = bt * lt * jnp.dtype(x.dtype).itemsize
    tile_out = bt * lt * jnp.dtype(out_dtype).itemsize
    tile_pe = lt * jnp.dtype(pe_flat.dtype).itemsize
    vmem_needed = 2 * (tile_in + tile_out + tile_pe)
    vmem_limit = int(min(48 * 1024 * 1024, max(16 * 1024 * 1024, vmem_needed + (2 << 20))))

    io_aliases = {}
    if donate_x and out_dtype == x.dtype:
        io_aliases = {0: 0}  # output aliases x_flat; only when x is dead after the add

    out_flat = pl.pallas_call(
        _add_pe_kernel,
        out_shape=jax.ShapeDtypeStruct((B, L), out_dtype),
        grid_spec=pl.GridSpec(
            grid=(grid_b, grid_l),
            in_specs=[
                pl.BlockSpec((bt, lt), lambda i, j: (i, j)),
                pl.BlockSpec((1, lt), lambda i, j: (0, j)),  # pe: constant over batch
            ],
            out_specs=pl.BlockSpec((bt, lt), lambda i, j: (i, j)),
        ),
        compiler_params=pltpu.CompilerParams(
            dimension_semantics=("parallel", "parallel"),
            vmem_limit_bytes=vmem_limit,
        ),
        input_output_aliases=io_aliases,
    )(x_flat, pe_flat)

    return out_flat.reshape(B, N, D)


def make_stft_pe_forward(pos_enc):
    """Caches the flattened f32 pe table once and returns a jitted forward."""
    pe_np = np.asarray(pos_enc, dtype=np.float32)
    N, D = pe_np.shape
    pe_flat = jnp.asarray(pe_np.reshape(1, N * D))

    @jax.jit
    def forward(x):
        return stft_pe_add(x, pe_flat)

    return forward


if __name__ == "__main__":
    # Module config: dim=32, h=8, w=8 -> tokens N = 64, 'add' mode.
    dim, h, w = 32, 8, 8
    batch = 2
    n_tokens = h * w

    pos_enc = make_stft_pos_enc(dim, h=h, w=w)          # (64, 32)
    forward = make_stft_pe_forward(pos_enc)

    key = jax.random.PRNGKey(0)
    x = jax.random.normal(key, (batch, n_tokens, dim), dtype=jnp.float32)

    out = forward(x)
    out = jax.block_until_ready(out)

    # correctness check vs plain-JAX reference (x + pos_enc broadcast)
    ref = x + pos_enc[None, :, :]
    np.testing.assert_allclose(np.asarray(out), np.asarray(ref), rtol=1e-6, atol=1e-6)

    print("KERNEL_OK")
</pallas_src>

<mosaic_0001>
module attributes {stable_mosaic.version = 11 : i64} {
  func.func @_add_pe_kernel(%arg0: i32, %arg1: i32, %arg2: memref<2x2048xf32, #tpu.memory_space<vmem>>, %arg3: memref<1x2048xf32, #tpu.memory_space<vmem>>, %arg4: memref<2x2048xf32, #tpu.memory_space<vmem>>) attributes {dimension_semantics = [#tpu.dimension_semantics<parallel>, #tpu.dimension_semantics<parallel>], iteration_bounds = array<i64: 1, 1>, scalar_prefetch = 0 : i64, scratch_operands = 0 : i64, tpu.core_type = #tpu.core_type<tc>, window_params = [{transform_indices = @transform_0, window_bounds = array<i64: 2, 2048>}, {transform_indices = @transform_1, window_bounds = array<i64: 1, 2048>}, {transform_indices = @transform_2, window_bounds = array<i64: 2, 2048>}]} {
    %c0 = arith.constant 0 : index
    %c0_0 = arith.constant 0 : index
    %0 = vector.load %arg2[%c0, %c0_0] : memref<2x2048xf32, #tpu.memory_space<vmem>>, vector<2x2048xf32>
    %c0_1 = arith.constant 0 : index
    %c0_2 = arith.constant 0 : index
    %1 = vector.load %arg3[%c0_1, %c0_2] : memref<1x2048xf32, #tpu.memory_space<vmem>>, vector<1x2048xf32>
    %2 = vector.broadcast %1 : vector<1x2048xf32> to vector<2x2048xf32>
    %3 = arith.addf %0, %2 : vector<2x2048xf32>
    %c0_3 = arith.constant 0 : index
    %c0_4 = arith.constant 0 : index
    %4 = vector.load %arg4[%c0_3, %c0_4] : memref<2x2048xf32, #tpu.memory_space<vmem>>, vector<2x2048xf32>
    tpu.vector_store %arg4[%c0_3, %c0_4], %3 {strides = array<i32>} : memref<2x2048xf32, #tpu.memory_space<vmem>>, vector<2x2048xf32>,
    return
  }
  func.func @transform_0(%arg0: i32, %arg1: i32) -> (i32, i32) {
    %c0_i32 = arith.constant 0 : i32
    return %arg0, %arg1 : i32, i32
  }
  func.func @transform_1(%arg0: i32, %arg1: i32) -> (i32, i32) {
    %c0_i32 = arith.constant 0 : i32
    %c0_i32_0 = arith.constant 0 : i32
    return %c0_i32, %arg1 : i32, i32
  }
  func.func @transform_2(%arg0: i32, %arg1: i32) -> (i32, i32) {
    %c0_i32 = arith.constant 0 : i32
    return %arg0, %arg1 : i32, i32
  }
}

</mosaic_0001>

<llo_original>
// kernel: forward.1
$region0: #{forward.1}
  #allocation0 [shape = 'u32[]', space=smem, size = 0x4, offset = 0x4, fixed_abs, tag = 'smem constant byte address 0x4 - core index']
  #allocation1 [shape = 'u32[72,128]{1,0:T(1,128)}', space=vmem, size = 0x9000, scoped, tag = 'internal scratch']
  %s0 = inlined_call_operand.vmem [shape: f32[2,2048], index: 0, kind: input, shape index: {}]
  %s1 = inlined_call_operand.vmem [shape: f32[1,2048], index: 1, kind: input, shape index: {}]
  %s2 = inlined_call_operand.vmem [shape: f32[2,2048], index: 2, kind: output, shape index: {}]
  %s3 = sld [smem:[#allocation0]]
  $region18: #{forward.1} parent=0
    _
  %s5 = ssub.s32 1, %s3
  %s6 = scalar_select 0, %s5, %s3
  // Predicated region
  $region2: #{forward.1} parent=0 // pred_check
    _
  $region3: #{forward.1} parent=0 // pred_check_branch
    %8 = sbr.rel (0) target = $region5
  $region4: #{forward.1} parent=0 // pred_region
    _
  $region5: #{forward.1} parent=0 // pred_fallthru
    _
  // Predicated region
  $region6: #{forward.1} parent=0 // pred_check
    _
  $region7: #{forward.1} parent=0 // pred_check_branch
    %10 = sbr.rel (0) target = $region9
  $region8: #{forward.1} parent=0 // pred_region
    _
  $region9: #{forward.1} parent=0 // pred_fallthru
    _
  %v11 = vld [vmem:[%s0] sm:$0xff]
  %v12 = vld [vmem:[%s0 + $0x8] sm:$0xff]
  %v13 = vld [vmem:[%s0 + $0x10] sm:$0xff]
  %v14 = vld [vmem:[%s0 + $0x18] sm:$0xff]
  %v15 = vld [vmem:[%s1] sm:$0xff]
  %v16 = vld [vmem:[%s1 + $0x8] sm:$0xff]
  %v19 = vperm.slane %v15, 0
  %v20 = vperm.slane %v15, 1
  %v21 = vperm.slane %v15, 2
  %v22 = vperm.slane %v15, 3
  %v23 = vperm.slane %v15, 4
  %v24 = vperm.slane %v15, 5
  %v25 = vperm.slane %v15, 6
  %v26 = vperm.slane %v15, 7
  %v27 = vperm.slane %v16, 0
  %v28 = vperm.slane %v16, 1
  %v29 = vperm.slane %v16, 2
  %v30 = vperm.slane %v16, 3
  %v31 = vperm.slane %v16, 4
  %v32 = vperm.slane %v16, 5
  %v33 = vperm.slane %v16, 6
  %v34 = vperm.slane %v16, 7
  %v35 = vrot.slane %v20, 6
  %v36 = vrot.slane %v21, 4
  %v37 = vrot.slane %v22, 2
  %v38 = vrot.slane %v24, 6
  %v39 = vrot.slane %v25, 4
  %v40 = vrot.slane %v26, 2
  %v41 = vrot.slane %v28, 6
  %v42 = vrot.slane %v29, 4
  %v43 = vrot.slane %v30, 2
  %v44 = vrot.slane %v32, 6
  %v45 = vrot.slane %v33, 4
  %v46 = vrot.slane %v34, 2
  %vm47 = vcmask 1041408
  %v48 = vsel %vm47, %v19, %v35
  %vm49 = vcmask 1045508
  %v50 = vsel %vm49, %v36, %v37
  %vm51 = vcmask 1043456
  %v52 = vsel %vm51, %v48, %v50
  %v53 = vsel %vm47, %v23, %v38
  %v54 = vsel %vm49, %v39, %v40
  %v55 = vsel %vm51, %v53, %v54
  %v56 = vsel %vm47, %v27, %v41
  %v57 = vsel %vm49, %v42, %v43
  %v58 = vsel %vm51, %v56, %v57
  %v59 = vsel %vm47, %v31, %v44
  %v60 = vsel %vm49, %v45, %v46
  %v61 = vsel %vm51, %v59, %v60
  %v66 = vadd.f32 %v11, %v52
  %v67 = vadd.f32 %v12, %v55
  %v68 = vadd.f32 %v13, %v58
  %v69 = vadd.f32 %v14, %v61
  %70 = vst [vmem:[%s2] sm:$0xff] %v66
  %71 = vst [vmem:[%s2 + $0x8] sm:$0xff] %v67
  %72 = vst [vmem:[%s2 + $0x10] sm:$0xff] %v68
  %73 = vst [vmem:[%s2 + $0x18] sm:$0xff] %v69
  // Predicated region
  $region10: #{forward.1} parent=0 // pred_check
    _
  $region11: #{forward.1} parent=0 // pred_check_branch
    %75 = sbr.rel (0) target = $region13
  $region12: #{forward.1} parent=0 // pred_region
    _
  $region13: #{forward.1} parent=0 // pred_fallthru
    _
  // Predicated region
  $region14: #{forward.1} parent=0 // pred_check
    _
  $region15: #{forward.1} parent=0 // pred_check_branch
    %77 = sbr.rel (0) target = $region17
  $region16: #{forward.1} parent=0 // pred_region
    _
  $region17: #{forward.1} parent=0 // pred_fallthru
    _

</llo_original>
